<compile_context>
chip_gen: v7x
topology: tpu7x:2x2x1
jax: 0.10.0
libtpu: 0.0.40
codegen_flags: <defaults>
</compile_context>

<pallas_src>
import functools

import jax
import jax.numpy as jnp
from jax.experimental import pallas as pl
from jax.experimental.pallas import tpu as pltpu

_MIB = 1024 * 1024


def _largest_divisor_tile(dim, cap, quantum):
    """Largest multiple of `quantum` that divides `dim` and is <= cap, else None."""
    t = min(dim, cap)
    t = (t // quantum) * quantum
    while t >= quantum:
        if dim % t == 0:
            return t
        t -= quantum
    return None


def _vmem_capacity_bytes():
    # Generation-aware VMEM capacity (128 MiB on v5e/v6e, 64 MiB per TC on v7x).
    try:
        cap = int(pltpu.get_tpu_info().vmem_capacity_bytes)
        if cap > 0:
            return cap
    except Exception:
        pass
    return 64 * _MIB  # conservative fallback = v7x per-TensorCore capacity


def mean_pool_sum_kernel(m_ref, h_ref, o_ref, *, ts):
    # m_ref: (1, S)   full mask row for this batch element (hidden dtype)
    # h_ref: (tS, tH) hidden-state tile (native dtype, no f32 upcast)
    # o_ref: (1, tH)  f32 masked-sum accumulator (resident across the S axis)
    si = pl.program_id(2)

    @pl.when(si == 0)
    def _():
        o_ref[...] = jnp.zeros_like(o_ref)

    if ts == m_ref.shape[-1]:          # single S tile: read the whole row
        m_tile = m_ref[...]
    else:                              # ts is a multiple of 128 by construction
        start = pl.multiple_of(si * ts, 128) if ts % 128 == 0 else si * ts
        m_tile = m_ref[:, pl.ds(start, ts)]

    # MXU contraction sums over S while applying the mask; f32 accumulate.
    # NOTE: this is an M=1 matmul (~1/256 MXU efficiency). Headroom vs HBM DMA
    # is ~2.8x (v6e) / ~1.9x (v5e) / ~1.2x (v7x); if bundle dumps show the
    # vmatmul push binding on v7x, reformulate with the hidden tile as the
    # streamed LHS against a (tS, 1) mask RHS and a (tH, 1) f32 scratch.
    o_ref[...] += jnp.dot(m_tile, h_ref[...], preferred_element_type=jnp.float32)


def mean_pooling(last_hidden_state, attention_mask, *, block_budget_bytes=None):
    """last_hidden_state: [B, S, H]; attention_mask: [B, S] -> [B, H] float32."""
    B, S, H = last_hidden_state.shape

    # v7x MXU has no integer path; keep the contraction in a float dtype.
    if not jnp.issubdtype(last_hidden_state.dtype, jnp.floating):
        last_hidden_state = last_hidden_state.astype(jnp.float32)
    itemsize = jnp.dtype(last_hidden_state.dtype).itemsize

    vmem_cap = _vmem_capacity_bytes()
    if block_budget_bytes is None:
        # Target ~4-8 MiB per hidden block => ~8-16 MiB double-buffered.
        block_budget_bytes = min(8 * _MIB, vmem_cap // 8)

    # tH first: prefer a full (or large) H tile -> longer contiguous HBM reads
    # and a lane-dense output, while leaving room for tS >= 128 in the budget.
    th_cap = max(128, block_budget_bytes // (min(S, 128) * itemsize))
    tH = _largest_divisor_tile(H, min(H, th_cap), 128) or H
    if B == 1 and tH == H:
        # Keep >= 2 parallel blocks so both v7x TensorCores get work.
        split = _largest_divisor_tile(H, H // 2, 128)
        if split is not None:
            tH = split

    # tS from the remaining byte budget (multiple of 128, or full S).
    ts_cap = max(128, block_budget_bytes // (tH * itemsize))
    if S <= ts_cap:
        tS = S
    else:
        tS = _largest_divisor_tile(S, ts_cap, 128) or S

    # VMEM accounting (pipeline double-buffers each block) + hardened fallback.
    hid_block = tS * tH * itemsize
    mask_block = S * itemsize
    out_block = tH * 4
    needed = 2 * (hid_block + mask_block + out_block)
    vmem_limit = min(int(vmem_cap * 0.85), max(2 * needed + 4 * _MIB, 32 * _MIB))
    if needed + 2 * _MIB > vmem_limit:
        raise ValueError(
            f"mean_pooling: tiles (tS={tS}, tH={tH}) need ~{needed / _MIB:.1f} MiB "
            f"of VMEM but only {vmem_limit / _MIB:.1f} MiB is available; "
            "S/H are not tileable to multiples of 128 at this size.")

    # Lane-dense mask: [B, 1, S] in the hidden dtype (0/1 exact in bf16/f32).
    mask3 = attention_mask.reshape(B, 1, S).astype(last_hidden_state.dtype)

    kernel = functools.partial(mean_pool_sum_kernel, ts=tS)
    cost = pl.CostEstimate(
        flops=2 * B * S * H,
        bytes_accessed=B * S * H * itemsize + B * S * itemsize + B * H * 4,
        transcendentals=0,
    )

    sum_emb = pl.pallas_call(
        kernel,
        out_shape=jax.ShapeDtypeStruct((B, 1, H), jnp.float32),
        grid_spec=pltpu.PrefetchScalarGridSpec(
            num_scalar_prefetch=0,
            grid=(B, H // tH, S // tS),          # reduction (S) axis last
            in_specs=[
                # Mask: one (1, S) row per batch element, re-fetched only when b changes.
                pl.BlockSpec((None, 1, S), lambda b, hi, si: (b, 0, 0)),
                # Hidden state: (tS, tH) tile streamed over the S axis.
                pl.BlockSpec((None, tS, tH), lambda b, hi, si: (b, si, hi)),
            ],
            out_specs=pl.BlockSpec((None, 1, tH), lambda b, hi, si: (b, 0, hi)),
        ),
        compiler_params=pltpu.CompilerParams(
            dimension_semantics=("parallel", "parallel", "arbitrary"),
            vmem_limit_bytes=vmem_limit,
        ),
        cost_estimate=cost,
    )(mask3, last_hidden_state)

    # Hoisted epilogue (XLA): mask-length sum, clamp(min=1e-9), divide.
    sum_mask = jnp.maximum(
        jnp.sum(attention_mask.astype(jnp.float32), axis=1, keepdims=True), 1e-9)
    return sum_emb.reshape(B, H) / sum_mask


def mean_pooling_ref(last_hidden_state, attention_mask):
    # Pure-JAX reference mirroring the PyTorch forward exactly.
    m = attention_mask[..., None].astype(jnp.float32)
    sum_embeddings = jnp.sum(last_hidden_state.astype(jnp.float32) * m, axis=1)
    sum_mask = jnp.maximum(jnp.sum(m, axis=1), 1e-9)
    return sum_embeddings / sum_mask


if __name__ == "__main__":
    B, S, H = 2, 8, 32
    key = jax.random.PRNGKey(0)
    k1, k2 = jax.random.split(key)
    last_hidden_state = jax.random.normal(k1, (B, S, H), dtype=jnp.float32)
    # Integer-like attention mask with some padding positions zeroed out.
    attention_mask = (jax.random.uniform(k2, (B, S)) > 0.3).astype(jnp.int32)

    out = mean_pooling(last_hidden_state, attention_mask)
    out = jax.block_until_ready(out)

    ref = mean_pooling_ref(last_hidden_state, attention_mask)
    assert out.shape == (B, H)
    assert jnp.allclose(out, ref, atol=1e-5, rtol=1e-5), "mismatch vs reference"
    print("KERNEL_OK")
</pallas_src>

<mosaic_0001>
module attributes {stable_mosaic.version = 11 : i64} {
  func.func @mean_pool_sum_kernel(%arg0: i32, %arg1: i32, %arg2: i32, %arg3: memref<1x1x8xf32, #tpu.memory_space<vmem>>, %arg4: memref<1x8x32xf32, #tpu.memory_space<vmem>>, %arg5: memref<1x1x32xf32, #tpu.memory_space<vmem>>) attributes {dimension_semantics = [#tpu.dimension_semantics<parallel>, #tpu.dimension_semantics<parallel>, #tpu.dimension_semantics<arbitrary>], iteration_bounds = array<i64: 2, 1, 1>, scalar_prefetch = 0 : i64, scratch_operands = 0 : i64, tpu.core_type = #tpu.core_type<tc>, window_params = [{transform_indices = @transform_0, window_bounds = array<i64: 1, 1, 8>}, {transform_indices = @transform_1, window_bounds = array<i64: 1, 8, 32>}, {transform_indices = @transform_2, window_bounds = array<i64: 1, 1, 32>}]} {
    %c0_i32 = arith.constant 0 : i32
    %0 = arith.cmpi eq, %arg2, %c0_i32 : i32
    %1 = arith.extui %0 : i1 to i32
    %c0_i32_0 = arith.constant 0 : i32
    %2 = arith.cmpi ne, %1, %c0_i32_0 : i32
    scf.if %2 {
      %cst_12 = arith.constant 0.000000e+00 : f32
      %14 = vector.broadcast %cst_12 : f32 to vector<1x32xf32>
      %c0_13 = arith.constant 0 : index
      %c0_14 = arith.constant 0 : index
      %c0_15 = arith.constant 0 : index
      %15 = vector.load %arg5[%c0_13, %c0_14, %c0_15] : memref<1x1x32xf32, #tpu.memory_space<vmem>>, vector<1x1x32xf32>
      %16 = vector.shape_cast %15 : vector<1x1x32xf32> to vector<1x32xf32>
      %17 = vector.shape_cast %14 : vector<1x32xf32> to vector<1x1x32xf32>
      tpu.vector_store %arg5[%c0_13, %c0_14, %c0_15], %17 {strides = array<i32>} : memref<1x1x32xf32, #tpu.memory_space<vmem>>, vector<1x1x32xf32>,
    } else {
    }
    %c0 = arith.constant 0 : index
    %c0_1 = arith.constant 0 : index
    %c0_2 = arith.constant 0 : index
    %3 = vector.load %arg3[%c0, %c0_1, %c0_2] : memref<1x1x8xf32, #tpu.memory_space<vmem>>, vector<1x1x8xf32>
    %4 = vector.shape_cast %3 : vector<1x1x8xf32> to vector<1x8xf32>
    %c0_3 = arith.constant 0 : index
    %c0_4 = arith.constant 0 : index
    %c0_5 = arith.constant 0 : index
    %5 = vector.load %arg5[%c0_3, %c0_4, %c0_5] : memref<1x1x32xf32, #tpu.memory_space<vmem>>, vector<1x1x32xf32>
    %6 = vector.shape_cast %5 : vector<1x1x32xf32> to vector<1x32xf32>
    %c0_6 = arith.constant 0 : index
    %c0_7 = arith.constant 0 : index
    %c0_8 = arith.constant 0 : index
    %7 = vector.load %arg4[%c0_6, %c0_7, %c0_8] : memref<1x8x32xf32, #tpu.memory_space<vmem>>, vector<1x8x32xf32>
    %8 = vector.shape_cast %7 : vector<1x8x32xf32> to vector<8x32xf32>
    %cst = arith.constant dense<0.000000e+00> : vector<1x32xf32>
    %9 = tpu.matmul %4, %8, %cst {dimension_numbers = #tpu.dot_dimension_numbers<[1], [0], [0], [1], [0, 0, 1, 1], [], []>} : vector<1x8xf32>, vector<8x32xf32>, vector<1x32xf32> -> vector<1x32xf32>
    %10 = arith.addf %6, %9 : vector<1x32xf32>
    %c0_9 = arith.constant 0 : index
    %c0_10 = arith.constant 0 : index
    %c0_11 = arith.constant 0 : index
    %11 = vector.load %arg5[%c0_9, %c0_10, %c0_11] : memref<1x1x32xf32, #tpu.memory_space<vmem>>, vector<1x1x32xf32>
    %12 = vector.shape_cast %11 : vector<1x1x32xf32> to vector<1x32xf32>
    %13 = vector.shape_cast %10 : vector<1x32xf32> to vector<1x1x32xf32>
    tpu.vector_store %arg5[%c0_9, %c0_10, %c0_11], %13 {strides = array<i32>} : memref<1x1x32xf32, #tpu.memory_space<vmem>>, vector<1x1x32xf32>,
    return
  }
  func.func @transform_0(%arg0: i32, %arg1: i32, %arg2: i32) -> (i32, i32, i32) {
    %c0_i32 = arith.constant 0 : i32
    %c0_i32_0 = arith.constant 0 : i32
    %c0_i32_1 = arith.constant 0 : i32
    return %arg0, %c0_i32, %c0_i32_0 : i32, i32, i32
  }
  func.func @transform_1(%arg0: i32, %arg1: i32, %arg2: i32) -> (i32, i32, i32) {
    %c0_i32 = arith.constant 0 : i32
    return %arg0, %arg2, %arg1 : i32, i32, i32
  }
  func.func @transform_2(%arg0: i32, %arg1: i32, %arg2: i32) -> (i32, i32, i32) {
    %c0_i32 = arith.constant 0 : i32
    %c0_i32_0 = arith.constant 0 : i32
    return %arg0, %c0_i32, %arg1 : i32, i32, i32
  }
}

</mosaic_0001>

<llo_original>
// kernel: tpu_custom_call.1
$region0: #{tpu_custom_call.1}
  #allocation0 [shape = 'u32[]', space=smem, size = 0x4, offset = 0x4, fixed_abs, tag = 'smem constant byte address 0x4 - core index']
  #allocation1 [shape = 'u32[144,128]{1,0:T(1,128)}', space=vmem, size = 0x12000, scoped, tag = 'internal scratch']
  %s0 = inlined_call_operand.hbm [shape: f32[2,1,8], index: 0, kind: input, shape index: {}]
  %s1 = inlined_call_operand.hbm [shape: f32[2,8,32], index: 1, kind: input, shape index: {}]
  %s2 = inlined_call_operand.hbm [shape: f32[2,1,32], index: 2, kind: output, shape index: {}]
  %s3 = sld [smem:[#allocation0]]
  $region53: #{tpu_custom_call.1} parent=0
    _
  %s5 = ssub.s32 1, %s3
  %s6 = scalar_select 0, %s5, %s3
  $region1: #{tpu_custom_call.1} parent=0
    #allocation2 [shape = 'u8[1024]{0}', space=vmem, size = 0x400, scoped, tag = 'input window, operand 0']
    #allocation3 [shape = 's32[2]{0}', space=sflag, size = 0x8, scoped, tag = 'scoped memory for tpu_custom_call.1']
    #allocation4 [shape = 's32[2]{0}', space=sflag, size = 0x8, scoped, tag = 'scoped memory for tpu_custom_call.1']
    #allocation5 [shape = 'u8[8192]{0}', space=vmem, size = 0x2000, scoped, tag = 'input window, operand 1']
    #allocation6 [shape = 's32[2]{0}', space=sflag, size = 0x8, scoped, tag = 'scoped memory for tpu_custom_call.1']
    #allocation7 [shape = 'u8[1024]{0}', space=vmem, size = 0x400, scoped, tag = 'output window, operand 0']
    %7 = vsyncpa [#allocation3], 0
    %s8 = scalar_lea.sflag [#allocation3], 1
    %9 = vsyncpa %s8, 0
    %10 = vsyncpa [#allocation6], 0
    %s11 = scalar_lea.sflag [#allocation6], 1
    %12 = vsyncpa %s11, 0
    %13 = vsyncpa [#allocation4], 0
    %s14 = scalar_lea.sflag [#allocation4], 1
    %15 = vsyncpa %s14, 0
    loop: start=0, step=1, limit=4
    $region2: #{tpu_custom_call.1} parent=1 // loop_pre_header
      _
    $region3: #{tpu_custom_call.1} parent=1 // loop_header
      %s17 = sphi 0, %s21
      %p18 = scmp.ge.s32.totalorder %s17, 4
      %s24 = sphi 0, %s43
      %s25 = sphi 0, %s39
      %s26 = sphi 0, %s35
      %s27 = sphi 0, %s24
      %s28 = sphi 0, %s25
      %s29 = sphi 0, %s26
      %s30 = sphi 0, %s27
      %s31 = sphi 0, %s28
      %s32 = sphi 0, %s29
      %s46 = sphi 0, %s48
      %s49 = sphi 0, %s46
      %s50 = sphi 0, %s49
      %s66 = sphi 0, %s50
      %s76 = sphi 0, %s78
      %s79 = sphi 0, %s76
      %s80 = sphi 0, %s79
      %s96 = sphi 0, %s80
      %s104 = sphi 0, %s106
      %s107 = sphi 0, %s104
      %s108 = sphi 0, %s107
      %s124 = sphi 0, %s108
    $region4: #{tpu_custom_call.1} parent=1 // loop_header_branch
      %20 = sbr.rel (%p18) target = $region8
    $region5: #{tpu_custom_call.1} parent=1 // loop_body
      %s22 = ssub.s32 %s17, 1
      %s23 = ssub.s32 %s17, 2
      %s33 = sadd.s32 1, %s26
      %p34 = scmp.ge.s32.totalorder %s33, 1
      %s35 = scalar_select %p34, 0, %s33
      %s36 = sadd.s32 1, %s25
      %s37 = scalar_select %p34, %s36, %s25
      %p38 = scmp.ge.s32.totalorder %s37, 1
      %s39 = scalar_select %p38, 0, %s37
      %s40 = sadd.s32 1, %s24
      %s41 = scalar_select %p38, %s40, %s24
      %p42 = scmp.ge.s32.totalorder %s41, 2
      %s43 = scalar_select %p42, 0, %s41
      %s44 = ssub.s32 %s24, %s43
      %p45 = scmp.eq.s32.totalorder %s44, 0
      %s47 = sadd.s32 %s46, 1
      %s48 = scalar_select %p45, %s46, %s47
      %p51 = pneg %p45
      %p52 = scmp.eq.s32.totalorder %s17, 1
      %p53 = por %p51, %p52
      %p54 = scmp.ne.s32.totalorder %s46, %s49
      %p55 = scmp.eq.s32.totalorder %s17, 0
      %p56 = por %p54, %p55
      %p57 = scmp.ne.s32.totalorder %s46, %s49
      %p58 = scmp.eq.s32.totalorder %s22, 1
      %p59 = por %p57, %p58
      %p60 = scmp.ne.s32.totalorder %s49, %s50
      %p61 = scmp.eq.s32.totalorder %s22, 0
      %p62 = por %p60, %p61
      %p63 = scmp.ne.s32.totalorder %s49, %s50
      %p64 = scmp.eq.s32.totalorder %s23, 1
      %p65 = por %p63, %p64
      %p67 = scmp.ne.s32.totalorder %s50, %s66
      %p68 = scmp.eq.s32.totalorder %s23, 0
      %p69 = por %p67, %p68
      %s70 = ssub.s32 %s24, %s43
      %s71 = ssub.s32 %s26, %s35
      %s72 = sor.u32 %s70, %s71
      %s73 = ssub.s32 %s25, %s39
      %s74 = sor.u32 %s72, %s73
      %p75 = scmp.eq.s32.totalorder %s74, 0
      %s77 = sadd.s32 %s76, 1
      %s78 = scalar_select %p75, %s76, %s77
      %p81 = pneg %p75
      %p82 = scmp.eq.s32.totalorder %s17, 1
      %p83 = por %p81, %p82
      %p84 = scmp.ne.s32.totalorder %s76, %s79
      %p85 = scmp.eq.s32.totalorder %s17, 0
      %p86 = por %p84, %p85
      %p87 = scmp.ne.s32.totalorder %s76, %s79
      %p88 = scmp.eq.s32.totalorder %s22, 1
      %p89 = por %p87, %p88
      %p90 = scmp.ne.s32.totalorder %s79, %s80
      %p91 = scmp.eq.s32.totalorder %s22, 0
      %p92 = por %p90, %p91
      %p93 = scmp.ne.s32.totalorder %s79, %s80
      %p94 = scmp.eq.s32.totalorder %s23, 1
      %p95 = por %p93, %p94
      %p97 = scmp.ne.s32.totalorder %s80, %s96
      %p98 = scmp.eq.s32.totalorder %s23, 0
      %p99 = por %p97, %p98
      %s100 = ssub.s32 %s24, %s43
      %s101 = ssub.s32 %s25, %s39
      %s102 = sor.u32 %s100, %s101
      %p103 = scmp.eq.s32.totalorder %s102, 0
      %s105 = sadd.s32 %s104, 1
      %s106 = scalar_select %p103, %s104, %s105
      %p109 = pneg %p103
      %p110 = scmp.eq.s32.totalorder %s17, 1
      %p111 = por %p109, %p110
      %p112 = scmp.ne.s32.totalorder %s104, %s107
      %p113 = scmp.eq.s32.totalorder %s17, 0
      %p114 = por %p112, %p113
      %p115 = scmp.ne.s32.totalorder %s104, %s107
      %p116 = scmp.eq.s32.totalorder %s22, 1
      %p117 = por %p115, %p116
      %p118 = scmp.ne.s32.totalorder %s107, %s108
      %p119 = scmp.eq.s32.totalorder %s22, 0
      %p120 = por %p118, %p119
      %p121 = scmp.ne.s32.totalorder %s107, %s108
      %p122 = scmp.eq.s32.totalorder %s23, 1
      %p123 = por %p121, %p122
      %p125 = scmp.ne.s32.totalorder %s108, %s124
      %p126 = scmp.eq.s32.totalorder %s23, 0
      %p127 = por %p125, %p126
      %p128 = scmp.le.s32.totalorder 1, %s17
      %p129 = scmp.lt.s32.totalorder %s17, 3
      %p130 = pnand %p128, %p129
      %p131 = pneg %p130
      // Predicated region
      $region9: #{tpu_custom_call.1} parent=5 // pred_check
        _
      $region10: #{tpu_custom_call.1} parent=5 // pred_check_branch
        %133 = sbr.rel (%p130) target = $region12
      $region11: #{tpu_custom_call.1} parent=5 // pred_region
        %s134 = ssub.s32 %s17, 1
      $region12: #{tpu_custom_call.1} parent=5 // pred_fallthru
        _
      %p135 = scmp.lt.s32.totalorder %s17, 2
      // Predicated region
      $region13: #{tpu_custom_call.1} parent=5 // pred_check
        %p136 = pneg %p135
      $region14: #{tpu_custom_call.1} parent=5 // pred_check_branch
        %138 = sbr.rel (%p136) target = $region16
      $region15: #{tpu_custom_call.1} parent=5 // pred_region
        // Predicated region
        $region17: #{tpu_custom_call.1} parent=15 // pred_check
          %p139 = pneg %p56
        $region18: #{tpu_custom_call.1} parent=15 // pred_check_branch
          %141 = sbr.rel (%p139) target = $region20
        $region19: #{tpu_custom_call.1} parent=15 // pred_region
          %s142 = sand.u32 %s46, 1
          %s143 = scalar_lea.sflag [#allocation3], %s142
          %s144 = sand.u32 %s46, 1
          %s145 = scalar_lea.vmem [#allocation2], %s144
          %s147 = ssub.s32 16, 16
          %148 = vsyncadd %s143, %s147
          %s149 = smul.addr %s24, 16
          %s150 = scalar_lea.hbm %s0, %s149
          %s152 = sshll.u32 %s145, 4
          %s153 = int_to_ptr.vmem [resolvable:$true] %s152
          %155 = dma.hbm_to_vmem [thread:$0]  %s150, 16, %s153, %s143
        $region20: #{tpu_custom_call.1} parent=15 // pred_fallthru
          _
        // Predicated region
        $region21: #{tpu_custom_call.1} parent=15 // pred_check
          %p156 = pneg %p86
        $region22: #{tpu_custom_call.1} parent=15 // pred_check_branch
          %158 = sbr.rel (%p156) target = $region24
        $region23: #{tpu_custom_call.1} parent=15 // pred_region
          %s159 = sand.u32 %s76, 1
          %s160 = scalar_lea.sflag [#allocation6], %s159
          %s161 = sand.u32 %s76, 1
          %s162 = smul.addr %s161, 8
          %s163 = scalar_lea.vmem [#allocation5], %s162
          %s165 = ssub.s32 128, 128
          %166 = vsyncadd %s160, %s165
          %s167 = sadd.s32 %s25, %s26
          %s168 = sadd.s32 %s167, %s24
          %s169 = smul.addr %s168, 128
          %s170 = scalar_lea.hbm %s1, %s169
          %s172 = sshll.u32 %s163, 4
          %s173 = int_to_ptr.vmem [resolvable:$true] %s172
          %175 = dma.hbm_to_vmem [thread:$0]  %s170, 128, %s173, %s160
        $region24: #{tpu_custom_call.1} parent=15 // pred_fallthru
          _
      $region16: #{tpu_custom_call.1} parent=5 // pred_fallthru
        _
      %p176 = scmp.le.s32.totalorder 1, %s17
      %p177 = scmp.lt.s32.totalorder %s17, 3
      %p178 = pnand %p176, %p177
      %p179 = pneg %p178
      // Predicated region
      $region25: #{tpu_custom_call.1} parent=5 // pred_check
        _
      $region26: #{tpu_custom_call.1} parent=5 // pred_check_branch
        %181 = sbr.rel (%p178) target = $region28
      $region27: #{tpu_custom_call.1} parent=5 // pred_region
        %s182 = ssub.s32 %s17, 1
        %s183 = sand.u32 %s49, 1
        %s184 = scalar_lea.sflag [#allocation3], %s183
        %s185 = sand.u32 %s49, 1
        %s186 = scalar_lea.vmem [#allocation2], %s185
        // Predicated region
        $region29: #{tpu_custom_call.1} parent=27 // pred_check
          %p187 = pneg %p62
        $region30: #{tpu_custom_call.1} parent=27 // pred_check_branch
          %189 = sbr.rel (%p187) target = $region32
        $region31: #{tpu_custom_call.1} parent=27 // pred_region
          %190 = dma.done %s184, 16
        $region32: #{tpu_custom_call.1} parent=27 // pred_fallthru
          _
        %s191 = sand.u32 %s79, 1
        %s192 = scalar_lea.sflag [#allocation6], %s191
        %s193 = sand.u32 %s79, 1
        %s194 = smul.addr %s193, 8
        %s195 = scalar_lea.vmem [#allocation5], %s194
        // Predicated region
        $region33: #{tpu_custom_call.1} parent=27 // pred_check
          %p196 = pneg %p92
        $region34: #{tpu_custom_call.1} parent=27 // pred_check_branch
          %198 = sbr.rel (%p196) target = $region36
        $region35: #{tpu_custom_call.1} parent=27 // pred_region
          %199 = dma.done %s192, 128
        $region36: #{tpu_custom_call.1} parent=27 // pred_fallthru
          _
        %s200 = sand.u32 %s49, 1
        %s201 = scalar_lea.sflag [#allocation3], %s200
        %s202 = sand.u32 %s49, 1
        %s203 = scalar_lea.vmem [#allocation2], %s202
        %p204 = pneg %p62
        %p205 = pneg %p59
        %s206 = sand.u32 %s79, 1
        %s207 = scalar_lea.sflag [#allocation6], %s206
        %s208 = sand.u32 %s79, 1
        %s209 = smul.addr %s208, 8
        %s210 = scalar_lea.vmem [#allocation5], %s209
        %p211 = pneg %p92
        %p212 = pneg %p89
        %p213 = pneg %p120
        %p214 = pneg %p117
        %s215 = sand.u32 %s107, 1
        %s216 = scalar_lea.sflag [#allocation4], %s215
        %s217 = sand.u32 %s107, 1
        %s218 = scalar_lea.vmem [#allocation7], %s217
        %p219 = scmp.eq.s32.totalorder %s29, 0
        // Predicated region
        $region37: #{tpu_custom_call.1} parent=27 // pred_check
          %p220 = pneg %p219
        $region38: #{tpu_custom_call.1} parent=27 // pred_check_branch
          %222 = sbr.rel (%p220) target = $region40
        $region39: #{tpu_custom_call.1} parent=27 // pred_region
          %vm223 = vcmask 253952
          %224 = vst.msk [vmem:[%s218] sm:$0x1] %vm223, 0.0
        $region40: #{tpu_custom_call.1} parent=27 // pred_fallthru
          _
        %v225 = vld [vmem:[%s186] sm:$0x1]
        %v226 = vld [vmem:[%s218] sm:$0x1]
        %v227 = vld [vmem:[%s195] sm:$0xff]
        %vm228 = vcmask 64512
        %v230 = vsel %vm228, %v225, 0
        %232 = vmatprep.subr.mxu0 0.0
        %233 = vmatpush1.msra.mxu0 %v227
        %234 = vmatprep.subr.mxu0 0.0
        %235 = vmatpush1.msra.mxu0 0.0
        %236 = vmatprep.subr.mxu0 0.0
        %237 = vmatpush1.msra.mxu0 0.0
        %238 = vmatprep.subr.mxu0 0.0
        %239 = vmatpush1.msra.mxu0 0.0
        %240 = vmatprep.subr.mxu0 0.0
        %241 = vmatpush1.msra.mxu0 0.0
        %242 = vmatprep.subr.mxu0 0.0
        %243 = vmatpush1.msra.mxu0 0.0
        %244 = vmatprep.subr.mxu0 0.0
        %245 = vmatpush1.msra.mxu0 0.0
        %246 = vmatprep.subr.mxu0 0.0
        %247 = vmatpush1.msra.mxu0 0.0
        %248 = vmatprep.subr.mxu0 0.0
        %249 = vmatpush1.msra.mxu0 0.0
        %250 = vmatprep.subr.mxu0 0.0
        %251 = vmatpush1.msra.mxu0 0.0
        %252 = vmatprep.subr.mxu0 0.0
        %253 = vmatpush1.msra.mxu0 0.0
        %254 = vmatprep.subr.mxu0 0.0
        %255 = vmatpush1.msra.mxu0 0.0
        %256 = vmatprep.subr.mxu0 0.0
        %257 = vmatpush1.msra.mxu0 0.0
        %258 = vmatprep.subr.mxu0 0.0
        %259 = vmatpush1.msra.mxu0 0.0
        %260 = vmatprep.subr.mxu0 0.0
        %261 = vmatpush1.msra.mxu0 0.0
        %262 = vmatprep.subr.mxu0 0.0
        %263 = vmatpush1.msra.mxu0 0.0
        %264 = vmatprep.subr.mxu0 0.0
        %265 = vmatpush1.msra.mxu0 0.0
        %266 = vmatprep.subr.mxu0 0.0
        %267 = vmatpush1.msra.mxu0 0.0
        %268 = vmatprep.subr.mxu0 0.0
        %269 = vmatpush1.msra.mxu0 0.0
        %270 = vmatprep.subr.mxu0 0.0
        %271 = vmatpush1.msra.mxu0 0.0
        %272 = vmatprep.subr.mxu0 0.0
        %273 = vmatpush1.msra.mxu0 0.0
        %274 = vmatprep.subr.mxu0 0.0
        %275 = vmatpush1.msra.mxu0 0.0
        %276 = vmatprep.subr.mxu0 0.0
        %277 = vmatpush1.msra.mxu0 0.0
        %278 = vmatprep.subr.mxu0 0.0
        %279 = vmatpush1.msra.mxu0 0.0
        %280 = vmatprep.subr.mxu0 0.0
        %281 = vmatpush1.msra.mxu0 0.0
        %282 = vmatprep.subr.mxu0 0.0
        %283 = vmatpush1.msra.mxu0 0.0
        %284 = vmatprep.subr.mxu0 0.0
        %285 = vmatpush1.msra.mxu0 0.0
        %286 = vmatprep.subr.mxu0 0.0
        %287 = vmatpush1.msra.mxu0 0.0
        %288 = vmatprep.subr.mxu0 0.0
        %289 = vmatpush1.msra.mxu0 0.0
        %290 = vmatprep.subr.mxu0 0.0
        %291 = vmatpush1.msra.mxu0 0.0
        %292 = vmatprep.subr.mxu0 0.0
        %293 = vmatpush1.msra.mxu0 0.0
        %294 = vmatprep.subr.mxu0 0.0
        %295 = vmatpush1.msra.mxu0 0.0
        %296 = vmatprep.mubr.f32.mxu0 0.0
        %297 = vmatmul.mubr.f32.gmra.mrb[0].mxu0 %v230
        %v298 = vpop.f32.mrb[0].mxu0
        %v299 = vadd.f32 0.0, %v298
        %v300 = vpop.f32.mrb[0].mxu0
        %301 = vdwg.mxu0
        %v302 = vadd.f32 %v226, %v299
        %vm303 = vcmask 253952
        %304 = vst.msk [vmem:[%s218] sm:$0x1] %vm303, %v302
        %s305 = sand.u32 %s107, 1
        %s306 = scalar_lea.sflag [#allocation4], %s305
        %s307 = sand.u32 %s107, 1
        %s308 = scalar_lea.vmem [#allocation7], %s307
        // Predicated region
        $region41: #{tpu_custom_call.1} parent=27 // pred_check
          %p309 = pneg %p117
        $region42: #{tpu_custom_call.1} parent=27 // pred_check_branch
          %311 = sbr.rel (%p309) target = $region44
        $region43: #{tpu_custom_call.1} parent=27 // pred_region
          %s313 = ssub.s32 16, 16
          %314 = vsyncadd %s306, %s313
          %s315 = sadd.s32 %s28, %s27
          %s316 = smul.addr %s315, 16
          %s317 = scalar_lea.hbm %s2, %s316
          %s319 = sshll.u32 %s308, 4
          %s320 = int_to_ptr.vmem [resolvable:$true] %s319
          %322 = dma.vmem_to_hbm [thread:$0]  %s320, 16, %s317, %s306
        $region44: #{tpu_custom_call.1} parent=27 // pred_fallthru
          _
      $region28: #{tpu_custom_call.1} parent=5 // pred_fallthru
        _
      %p323 = scmp.le.s32.totalorder 2, %s17
      // Predicated region
      $region45: #{tpu_custom_call.1} parent=5 // pred_check
        %p324 = pneg %p323
      $region46: #{tpu_custom_call.1} parent=5 // pred_check_branch
        %326 = sbr.rel (%p324) target = $region48
      $region47: #{tpu_custom_call.1} parent=5 // pred_region
        %s327 = ssub.s32 %s17, 2
        // Predicated region
        $region49: #{tpu_custom_call.1} parent=47 // pred_check
          %p328 = pneg %p123
        $region50: #{tpu_custom_call.1} parent=47 // pred_check_branch
          %330 = sbr.rel (%p328) target = $region52
        $region51: #{tpu_custom_call.1} parent=47 // pred_region
          %s331 = sand.u32 %s108, 1
          %s332 = scalar_lea.sflag [#allocation4], %s331
          %s333 = sand.u32 %s108, 1
          %s334 = scalar_lea.vmem [#allocation7], %s333
          %335 = dma.done %s332, 16
        $region52: #{tpu_custom_call.1} parent=47 // pred_fallthru
          _
      $region48: #{tpu_custom_call.1} parent=5 // pred_fallthru
        _
    $region6: #{tpu_custom_call.1} parent=1 // loop_footer
      %s21 = sadd.s32 1, %s17
    $region7: #{tpu_custom_call.1} parent=1 // loop_footer_branch
      %16 = sbr.rel target = $region3
    $region8: #{tpu_custom_call.1} parent=1 // loop_exit
      _
    %336 = vsyncpa [#allocation3], 1
    %s337 = scalar_lea.sflag [#allocation3], 1
    %338 = vsyncpa %s337, 1
    %339 = vsyncpa [#allocation6], 1
    %s340 = scalar_lea.sflag [#allocation6], 1
    %341 = vsyncpa %s340, 1
    %342 = vsyncpa [#allocation4], 1
    %s343 = scalar_lea.sflag [#allocation4], 1
    %344 = vsyncpa %s343, 1

</llo_original>
